<compile_context>
chip_gen: v7x
topology: tpu7x:2x2x1
jax: 0.10.0
libtpu: 0.0.40
codegen_flags: <defaults>
</compile_context>

<pallas_src>
import jax
import jax.numpy as jnp
from jax.experimental import pallas as pl
from jax.experimental.pallas import tpu as pltpu


# ---------------------------------------------------------------------------
# Kernel 1: adaLN modulation, once per call, batched over B.
#   shift = SiLU(c) @ W_shift + b_shift
#   scale = SiLU(c) @ W_scale + b_scale
# ---------------------------------------------------------------------------
def adaln_kernel(c_ref, ws_ref, wsc_ref, bs_ref, bsc_ref, shift_ref, scale_ref):
    c = c_ref[...].astype(jnp.float32)                         # (B, H)
    silu_c = c * jax.nn.sigmoid(c)                             # SiLU (VPU + EUP)
    silu_c = silu_c.astype(ws_ref.dtype)
    shift = jnp.dot(silu_c, ws_ref[...], preferred_element_type=jnp.float32)
    scale = jnp.dot(silu_c, wsc_ref[...], preferred_element_type=jnp.float32)
    shift_ref[...] = shift + bs_ref[...].astype(jnp.float32)   # (B, H)
    scale_ref[...] = scale + bsc_ref[...].astype(jnp.float32)  # (B, H)


# ---------------------------------------------------------------------------
# Kernel 2: LayerNorm (no affine) -> modulate -> final Linear, per (b, seq tile)
# ---------------------------------------------------------------------------
def final_layer_kernel(x_ref, shift_ref, scale_ref, wlin_ref, blin_ref, out_ref):
    x = x_ref[0].astype(jnp.float32)                           # (tT, H)

    # --- LayerNorm (no affine, eps=1e-6); fused one-pass statistics -------
    mean = jnp.mean(x, axis=-1, keepdims=True)                 # (tT, 1)
    mean_sq = jnp.mean(x * x, axis=-1, keepdims=True)          # (tT, 1)
    var = jnp.maximum(mean_sq - mean * mean, 0.0)
    x_norm = (x - mean) * jax.lax.rsqrt(var + 1e-6)

    # --- adaLN modulation (per-batch shift/scale, broadcast over rows) ----
    shift = shift_ref[0].astype(jnp.float32)                   # (1, H)
    scale = scale_ref[0].astype(jnp.float32)                   # (1, H)
    x_mod = x_norm * (1.0 + scale) + shift                     # (tT, H)

    # --- final linear projection: MXU in native weight dtype, f32 accum ---
    w = wlin_ref[...]                                          # (H, O)
    out = jnp.dot(x_mod.astype(w.dtype), w,
                  preferred_element_type=jnp.float32)          # (tT, O) f32
    out = out + blin_ref[...].astype(jnp.float32)              # (1, O) broadcast

    out_ref[...] = out[None].astype(out_ref.dtype)             # (1, tT, O)


def final_layer(x, c, w_ada, b_ada, w_lin, b_lin, *, seq_tile=512):
    """x: (B, T, H), c: (B, H), w_ada: (H, 2H), b_ada: (1, 2H),
       w_lin: (H, O), b_lin: (1, O)  ->  (B, T, O)"""
    B, T, H = x.shape
    O = w_lin.shape[1]
    assert seq_tile % 8 == 0, "seq_tile must be a multiple of 8"

    # ---- adaLN in its own small Pallas kernel (runs once for the batch) ----
    w_shift, w_scale = w_ada[:, :H], w_ada[:, H:]
    b_shift, b_scale = b_ada[:, :H], b_ada[:, H:]
    shift, scale = pl.pallas_call(
        adaln_kernel,
        out_shape=(jax.ShapeDtypeStruct((B, H), jnp.float32),
                   jax.ShapeDtypeStruct((B, H), jnp.float32)),
        grid=(1,),
        in_specs=[
            pl.BlockSpec((B, H), lambda i: (0, 0)),   # c
            pl.BlockSpec((H, H), lambda i: (0, 0)),   # W_shift
            pl.BlockSpec((H, H), lambda i: (0, 0)),   # W_scale
            pl.BlockSpec((1, H), lambda i: (0, 0)),   # b_shift
            pl.BlockSpec((1, H), lambda i: (0, 0)),   # b_scale
        ],
        out_specs=(pl.BlockSpec((B, H), lambda i: (0, 0)),
                   pl.BlockSpec((B, H), lambda i: (0, 0))),
    )(c, w_shift, w_scale, b_shift, b_scale)

    # Reshape to (B, 1, H) so the main kernel's blocks are trivially layout-legal.
    shift3 = shift[:, None, :]
    scale3 = scale[:, None, :]

    # Sequence tiling: full T if small, else a multiple-of-8 tile with a
    # (possibly partial) last block handled by Pallas.
    tT = T if T <= seq_tile else seq_tile
    grid = (B, pl.cdiv(T, tT))

    itemsize = x.dtype.itemsize
    bytes_accessed = int(
        B * T * H * itemsize            # x reads
        + B * T * O * itemsize          # out writes
        + 2 * B * H * 4                 # shift / scale
        + (H * O + O) * w_lin.dtype.itemsize
    )
    cost = pl.CostEstimate(
        flops=2 * B * T * H * O + 8 * B * T * H,
        transcendentals=B * T,          # rsqrt per row
        bytes_accessed=bytes_accessed,
    )

    return pl.pallas_call(
        final_layer_kernel,
        out_shape=jax.ShapeDtypeStruct((B, T, O), x.dtype),
        grid_spec=pltpu.PrefetchScalarGridSpec(
            num_scalar_prefetch=0,
            grid=grid,
            in_specs=[
                pl.BlockSpec((1, tT, H), lambda b, t: (b, t, 0)),   # x tile
                pl.BlockSpec((1, 1, H), lambda b, t: (b, 0, 0)),    # shift (per-batch)
                pl.BlockSpec((1, 1, H), lambda b, t: (b, 0, 0)),    # scale (per-batch)
                pl.BlockSpec((H, O), lambda b, t: (0, 0)),          # W_lin (full, small)
                pl.BlockSpec((1, O), lambda b, t: (0, 0)),          # b_lin (full, small)
            ],
            out_specs=pl.BlockSpec((1, tT, O), lambda b, t: (b, t, 0)),
        ),
        compiler_params=pltpu.CompilerParams(
            dimension_semantics=("parallel", "parallel"),
            vmem_limit_bytes=32 * 1024 * 1024,
        ),
        cost_estimate=cost,
    )(x, shift3, scale3, w_lin, b_lin)


def final_layer_ref(x, c, w_ada, b_ada, w_lin, b_lin):
    """Pure-JAX reference mirroring the PyTorch FinalLayer.forward."""
    silu_c = c * jax.nn.sigmoid(c)
    mod = silu_c @ w_ada + b_ada[0]
    H = c.shape[-1]
    shift, scale = mod[:, :H], mod[:, H:]
    mean = jnp.mean(x, axis=-1, keepdims=True)
    var = jnp.mean(jnp.square(x - mean), axis=-1, keepdims=True)
    x_norm = (x - mean) / jnp.sqrt(var + 1e-6)
    x_mod = x_norm * (1.0 + scale[:, None, :]) + shift[:, None, :]
    return x_mod @ w_lin + b_lin[0]


if __name__ == "__main__":
    # Small shapes consistent with DiT's FinalLayer:
    #   hidden_size=32, patch_size=2, out_channels=4  ->  out_dim = 2*2*4 = 16
    B, T, H = 2, 8, 32
    patch_size, out_channels = 2, 4
    O = patch_size * patch_size * out_channels

    key = jax.random.PRNGKey(0)
    kx, kc, kwa, kba, kwl, kbl = jax.random.split(key, 6)

    x = jax.random.normal(kx, (B, T, H), dtype=jnp.float32)
    c = jax.random.normal(kc, (B, H), dtype=jnp.float32)

    # Parameters stored as (in, out) so the compute is x @ W + b.
    w_ada = jax.random.normal(kwa, (H, 2 * H), dtype=jnp.float32) * 0.02
    b_ada = jax.random.normal(kba, (1, 2 * H), dtype=jnp.float32) * 0.02
    w_lin = jax.random.normal(kwl, (H, O), dtype=jnp.float32) * 0.02
    b_lin = jax.random.normal(kbl, (1, O), dtype=jnp.float32) * 0.02

    out = final_layer(x, c, w_ada, b_ada, w_lin, b_lin)
    out = jax.block_until_ready(out)

    ref = final_layer_ref(x, c, w_ada, b_ada, w_lin, b_lin)
    assert out.shape == (B, T, O)
    assert jnp.allclose(out, ref, atol=1e-4, rtol=1e-4), "Pallas kernel mismatch vs reference"

    print("KERNEL_OK")
</pallas_src>

<mosaic_0001>
module attributes {stable_mosaic.version = 11 : i64} {
  func.func @adaln_kernel(%arg0: i32, %arg1: memref<2x32xf32, #tpu.memory_space<vmem>>, %arg2: memref<32x32xf32, #tpu.memory_space<vmem>>, %arg3: memref<32x32xf32, #tpu.memory_space<vmem>>, %arg4: memref<1x32xf32, #tpu.memory_space<vmem>>, %arg5: memref<1x32xf32, #tpu.memory_space<vmem>>, %arg6: memref<2x32xf32, #tpu.memory_space<vmem>>, %arg7: memref<2x32xf32, #tpu.memory_space<vmem>>) attributes {dimension_semantics = [#tpu.dimension_semantics<arbitrary>], iteration_bounds = array<i64: 1>, scalar_prefetch = 0 : i64, scratch_operands = 0 : i64, tpu.core_type = #tpu.core_type<tc>, window_params = [{pipeline_mode = #tpu.pipeline_mode<synchronous>, transform_indices = @transform_0, window_bounds = array<i64: 2, 32>}, {pipeline_mode = #tpu.pipeline_mode<synchronous>, transform_indices = @transform_1, window_bounds = array<i64: 32, 32>}, {pipeline_mode = #tpu.pipeline_mode<synchronous>, transform_indices = @transform_2, window_bounds = array<i64: 32, 32>}, {pipeline_mode = #tpu.pipeline_mode<synchronous>, transform_indices = @transform_3, window_bounds = array<i64: 1, 32>}, {pipeline_mode = #tpu.pipeline_mode<synchronous>, transform_indices = @transform_4, window_bounds = array<i64: 1, 32>}, {pipeline_mode = #tpu.pipeline_mode<synchronous>, transform_indices = @transform_5, window_bounds = array<i64: 2, 32>}, {pipeline_mode = #tpu.pipeline_mode<synchronous>, transform_indices = @transform_6, window_bounds = array<i64: 2, 32>}]} {
    %c0 = arith.constant 0 : index
    %c0_0 = arith.constant 0 : index
    %0 = vector.load %arg1[%c0, %c0_0] : memref<2x32xf32, #tpu.memory_space<vmem>>, vector<2x32xf32>
    %1 = arith.negf %0 : vector<2x32xf32>
    %2 = math.exp %1 : vector<2x32xf32>
    %cst = arith.constant 1.000000e+00 : f32
    %3 = vector.broadcast %cst : f32 to vector<2x32xf32>
    %4 = arith.addf %3, %2 : vector<2x32xf32>
    %5 = arith.divf %3, %4 : vector<2x32xf32>
    %6 = arith.mulf %0, %5 : vector<2x32xf32>
    %c0_1 = arith.constant 0 : index
    %c0_2 = arith.constant 0 : index
    %7 = vector.load %arg2[%c0_1, %c0_2] : memref<32x32xf32, #tpu.memory_space<vmem>>, vector<32x32xf32>
    %cst_3 = arith.constant dense<0.000000e+00> : vector<2x32xf32>
    %8 = tpu.matmul %6, %7, %cst_3 {dimension_numbers = #tpu.dot_dimension_numbers<[1], [0], [0], [1], [0, 0, 1, 1], [], []>} : vector<2x32xf32>, vector<32x32xf32>, vector<2x32xf32> -> vector<2x32xf32>
    %c0_4 = arith.constant 0 : index
    %c0_5 = arith.constant 0 : index
    %9 = vector.load %arg3[%c0_4, %c0_5] : memref<32x32xf32, #tpu.memory_space<vmem>>, vector<32x32xf32>
    %cst_6 = arith.constant dense<0.000000e+00> : vector<2x32xf32>
    %10 = tpu.matmul %6, %9, %cst_6 {dimension_numbers = #tpu.dot_dimension_numbers<[1], [0], [0], [1], [0, 0, 1, 1], [], []>} : vector<2x32xf32>, vector<32x32xf32>, vector<2x32xf32> -> vector<2x32xf32>
    %c0_7 = arith.constant 0 : index
    %c0_8 = arith.constant 0 : index
    %11 = vector.load %arg4[%c0_7, %c0_8] : memref<1x32xf32, #tpu.memory_space<vmem>>, vector<1x32xf32>
    %12 = vector.broadcast %11 : vector<1x32xf32> to vector<2x32xf32>
    %13 = arith.addf %8, %12 : vector<2x32xf32>
    %c0_9 = arith.constant 0 : index
    %c0_10 = arith.constant 0 : index
    %14 = vector.load %arg6[%c0_9, %c0_10] : memref<2x32xf32, #tpu.memory_space<vmem>>, vector<2x32xf32>
    tpu.vector_store %arg6[%c0_9, %c0_10], %13 {strides = array<i32>} : memref<2x32xf32, #tpu.memory_space<vmem>>, vector<2x32xf32>,
    %c0_11 = arith.constant 0 : index
    %c0_12 = arith.constant 0 : index
    %15 = vector.load %arg5[%c0_11, %c0_12] : memref<1x32xf32, #tpu.memory_space<vmem>>, vector<1x32xf32>
    %16 = vector.broadcast %15 : vector<1x32xf32> to vector<2x32xf32>
    %17 = arith.addf %10, %16 : vector<2x32xf32>
    %c0_13 = arith.constant 0 : index
    %c0_14 = arith.constant 0 : index
    %18 = vector.load %arg7[%c0_13, %c0_14] : memref<2x32xf32, #tpu.memory_space<vmem>>, vector<2x32xf32>
    tpu.vector_store %arg7[%c0_13, %c0_14], %17 {strides = array<i32>} : memref<2x32xf32, #tpu.memory_space<vmem>>, vector<2x32xf32>,
    return
  }
  func.func @transform_0(%arg0: i32) -> (i32, i32) {
    %c0_i32 = arith.constant 0 : i32
    %c0_i32_0 = arith.constant 0 : i32
    %c0_i32_1 = arith.constant 0 : i32
    return %c0_i32, %c0_i32_0 : i32, i32
  }
  func.func @transform_1(%arg0: i32) -> (i32, i32) {
    %c0_i32 = arith.constant 0 : i32
    %c0_i32_0 = arith.constant 0 : i32
    %c0_i32_1 = arith.constant 0 : i32
    return %c0_i32, %c0_i32_0 : i32, i32
  }
  func.func @transform_2(%arg0: i32) -> (i32, i32) {
    %c0_i32 = arith.constant 0 : i32
    %c0_i32_0 = arith.constant 0 : i32
    %c0_i32_1 = arith.constant 0 : i32
    return %c0_i32, %c0_i32_0 : i32, i32
  }
  func.func @transform_3(%arg0: i32) -> (i32, i32) {
    %c0_i32 = arith.constant 0 : i32
    %c0_i32_0 = arith.constant 0 : i32
    %c0_i32_1 = arith.constant 0 : i32
    return %c0_i32, %c0_i32_0 : i32, i32
  }
  func.func @transform_4(%arg0: i32) -> (i32, i32) {
    %c0_i32 = arith.constant 0 : i32
    %c0_i32_0 = arith.constant 0 : i32
    %c0_i32_1 = arith.constant 0 : i32
    return %c0_i32, %c0_i32_0 : i32, i32
  }
  func.func @transform_5(%arg0: i32) -> (i32, i32) {
    %c0_i32 = arith.constant 0 : i32
    %c0_i32_0 = arith.constant 0 : i32
    %c0_i32_1 = arith.constant 0 : i32
    return %c0_i32, %c0_i32_0 : i32, i32
  }
  func.func @transform_6(%arg0: i32) -> (i32, i32) {
    %c0_i32 = arith.constant 0 : i32
    %c0_i32_0 = arith.constant 0 : i32
    %c0_i32_1 = arith.constant 0 : i32
    return %c0_i32, %c0_i32_0 : i32, i32
  }
}

</mosaic_0001>

<llo_original>
// kernel: tpu_custom_call.1
$region0: #{tpu_custom_call.1}
  #allocation0 [shape = 'u32[]', space=smem, size = 0x4, offset = 0x4, fixed_abs, tag = 'smem constant byte address 0x4 - core index']
  #allocation1 [shape = 'u32[144,128]{1,0:T(1,128)}', space=vmem, size = 0x12000, scoped, tag = 'internal scratch']
  %s0 = inlined_call_operand.hbm [shape: f32[2,32], index: 0, kind: input, shape index: {}]
  %s1 = inlined_call_operand.hbm [shape: f32[32,32], index: 1, kind: input, shape index: {}]
  %s2 = inlined_call_operand.hbm [shape: f32[32,32], index: 2, kind: input, shape index: {}]
  %s3 = inlined_call_operand.vmem [shape: f32[1,32], index: 3, kind: input, shape index: {}]
  %s4 = inlined_call_operand.vmem [shape: f32[1,32], index: 4, kind: input, shape index: {}]
  %s5 = inlined_call_operand.hbm [shape: f32[2,32], index: 5, kind: output, shape index: {0}]
  %s6 = inlined_call_operand.hbm [shape: f32[2,32], index: 6, kind: output, shape index: {1}]
  %7 = xla_tuple %s5, %s6
  %s8 = sld [smem:[#allocation0]]
  $region50: #{tpu_custom_call.1} parent=0
    _
  %s10 = ssub.s32 1, %s8
  %s11 = scalar_select 0, %s10, %s8
  $region1: #{tpu_custom_call.1} parent=0
    #allocation2 [shape = 'u8[1024]{0}', space=vmem, size = 0x400, scoped, tag = 'input window, operand 0, single buffered']
    #allocation3 [shape = 's32[1]{0}', space=sflag, size = 0x4, scoped, tag = 'scoped memory for tpu_custom_call.1']
    #allocation4 [shape = 's32[1]{0}', space=sflag, size = 0x4, scoped, tag = 'scoped memory for tpu_custom_call.1']
    #allocation5 [shape = 'u8[16384]{0}', space=vmem, size = 0x4000, scoped, tag = 'input window, operand 1, single buffered']
    #allocation6 [shape = 's32[1]{0}', space=sflag, size = 0x4, scoped, tag = 'scoped memory for tpu_custom_call.1']
    #allocation7 [shape = 'u8[16384]{0}', space=vmem, size = 0x4000, scoped, tag = 'input window, operand 2, single buffered']
    #allocation8 [shape = 'u8[1024]{0}', space=vmem, size = 0x400, scoped, tag = 'output window, operand 0, single buffered']
    #allocation9 [shape = 'u8[1024]{0}', space=vmem, size = 0x400, scoped, tag = 'output window, operand 1, single buffered']
    #allocation10 [shape = 's32[1]{0}', space=sflag, size = 0x4, scoped, tag = 'scoped memory for tpu_custom_call.1']
    %12 = vsyncpa [#allocation3], 0
    %13 = vsyncpa [#allocation6], 0
    %14 = vsyncpa [#allocation4], 0
    %15 = vsyncpa [#allocation10], 0
    // Predicated region
    $region2: #{tpu_custom_call.1} parent=1 // pred_check
      _
    $region3: #{tpu_custom_call.1} parent=1 // pred_check_branch
      %17 = sbr.rel (0) target = $region5
    $region4: #{tpu_custom_call.1} parent=1 // pred_region
      %s19 = ssub.s32 32, 32
      %20 = vsyncadd [#allocation3], %s19
      %s22 = sshll.u32 [#allocation2], 4
      %s23 = int_to_ptr.vmem [resolvable:$true] %s22
      %25 = dma.hbm_to_vmem [thread:$0]  %s0, 32, %s23, [#allocation3]
    $region5: #{tpu_custom_call.1} parent=1 // pred_fallthru
      _
    // Predicated region
    $region6: #{tpu_custom_call.1} parent=1 // pred_check
      _
    $region7: #{tpu_custom_call.1} parent=1 // pred_check_branch
      %27 = sbr.rel (0) target = $region9
    $region8: #{tpu_custom_call.1} parent=1 // pred_region
      %s29 = ssub.s32 512, 512
      %30 = vsyncadd [#allocation6], %s29
      %s31 = sshll.u32 [#allocation5], 4
      %s32 = int_to_ptr.vmem [resolvable:$true] %s31
      %37 = dma.hbm_to_vmem [thread:$0]  %s1, 512, %s32, [#allocation6], 128, 128, 8
    $region9: #{tpu_custom_call.1} parent=1 // pred_fallthru
      _
    // Predicated region
    $region10: #{tpu_custom_call.1} parent=1 // pred_check
      _
    $region11: #{tpu_custom_call.1} parent=1 // pred_check_branch
      %39 = sbr.rel (0) target = $region13
    $region12: #{tpu_custom_call.1} parent=1 // pred_region
      %s41 = ssub.s32 512, 512
      %42 = vsyncadd [#allocation6], %s41
      %s43 = sshll.u32 [#allocation7], 4
      %s44 = int_to_ptr.vmem [resolvable:$true] %s43
      %49 = dma.hbm_to_vmem [thread:$0]  %s2, 512, %s44, [#allocation6], 128, 128, 8
    $region13: #{tpu_custom_call.1} parent=1 // pred_fallthru
      _
    // Predicated region
    $region14: #{tpu_custom_call.1} parent=1 // pred_check
      _
    $region15: #{tpu_custom_call.1} parent=1 // pred_check_branch
      %51 = sbr.rel (0) target = $region17
    $region16: #{tpu_custom_call.1} parent=1 // pred_region
      _
    $region17: #{tpu_custom_call.1} parent=1 // pred_fallthru
      _
    // Predicated region
    $region18: #{tpu_custom_call.1} parent=1 // pred_check
      _
    $region19: #{tpu_custom_call.1} parent=1 // pred_check_branch
      %53 = sbr.rel (0) target = $region21
    $region20: #{tpu_custom_call.1} parent=1 // pred_region
      _
    $region21: #{tpu_custom_call.1} parent=1 // pred_fallthru
      _
    // Predicated region
    $region22: #{tpu_custom_call.1} parent=1 // pred_check
      _
    $region23: #{tpu_custom_call.1} parent=1 // pred_check_branch
      %55 = sbr.rel (0) target = $region25
    $region24: #{tpu_custom_call.1} parent=1 // pred_region
      %56 = dma.done [#allocation3], 32
    $region25: #{tpu_custom_call.1} parent=1 // pred_fallthru
      _
    // Predicated region
    $region26: #{tpu_custom_call.1} parent=1 // pred_check
      _
    $region27: #{tpu_custom_call.1} parent=1 // pred_check_branch
      %58 = sbr.rel (0) target = $region29
    $region28: #{tpu_custom_call.1} parent=1 // pred_region
      %59 = dma.done [#allocation6], 512
    $region29: #{tpu_custom_call.1} parent=1 // pred_fallthru
      _
    // Predicated region
    $region30: #{tpu_custom_call.1} parent=1 // pred_check
      _
    $region31: #{tpu_custom_call.1} parent=1 // pred_check_branch
      %61 = sbr.rel (0) target = $region33
    $region32: #{tpu_custom_call.1} parent=1 // pred_region
      %62 = dma.done [#allocation6], 512
    $region33: #{tpu_custom_call.1} parent=1 // pred_fallthru
      _
    %v63 = vld [vmem:[#allocation2] sm:$0x3]
    %v64 = vxor.u32 %v63, 2147483648
    %v65 = vmul.f32 %v64, 1.442695
    %v66 = vpow.pop %v65
    %v67 = vadd.f32 %v66, 1.0
    %v68 = vrcp.pop %v67
    %v69 = vmul.f32 1.0, %v68
    %v70 = vmul.f32 %v63, %v69
    %v71 = vld [vmem:[#allocation5] sm:$0xff]
    %v72 = vld [vmem:[#allocation5 + $0x8] sm:$0xff]
    %v73 = vld [vmem:[#allocation5 + $0x10] sm:$0xff]
    %v74 = vld [vmem:[#allocation5 + $0x18] sm:$0xff]
    %v75 = vld [vmem:[#allocation7] sm:$0xff]
    %v76 = vld [vmem:[#allocation7 + $0x8] sm:$0xff]
    %v77 = vld [vmem:[#allocation7 + $0x10] sm:$0xff]
    %v78 = vld [vmem:[#allocation7 + $0x18] sm:$0xff]
    %v79 = vld [vmem:[%s3] sm:$0x1]
    %v81 = vlaneseq
    %v82 = vshrl.u32 %v81, 7
    %v83 = vsub.s32 0, %v82
    %v84 = vrot.slane %v79, %v83
    %vm86 = vcmask 261120
    %v88 = vsel %vm86, %v70, 0
    %90 = vmatprep.subr.mxu0 0.0
    %91 = vmatpush1.msra.mxu0 %v71
    %92 = vmatprep.subr.mxu0 0.0
    %93 = vmatpush1.msra.mxu0 %v72
    %94 = vmatprep.subr.mxu0 0.0
    %95 = vmatpush1.msra.mxu0 %v73
    %96 = vmatprep.subr.mxu0 0.0
    %97 = vmatpush1.msra.mxu0 %v74
    %98 = vmatprep.subr.mxu0 0.0
    %99 = vmatpush1.msra.mxu0 0.0
    %100 = vmatprep.subr.mxu0 0.0
    %101 = vmatpush1.msra.mxu0 0.0
    %102 = vmatprep.subr.mxu0 0.0
    %103 = vmatpush1.msra.mxu0 0.0
    %104 = vmatprep.subr.mxu0 0.0
    %105 = vmatpush1.msra.mxu0 0.0
    %106 = vmatprep.subr.mxu0 0.0
    %107 = vmatpush1.msra.mxu0 0.0
    %108 = vmatprep.subr.mxu0 0.0
    %109 = vmatpush1.msra.mxu0 0.0
    %110 = vmatprep.subr.mxu0 0.0
    %111 = vmatpush1.msra.mxu0 0.0
    %112 = vmatprep.subr.mxu0 0.0
    %113 = vmatpush1.msra.mxu0 0.0
    %114 = vmatprep.subr.mxu0 0.0
    %115 = vmatpush1.msra.mxu0 0.0
    %116 = vmatprep.subr.mxu0 0.0
    %117 = vmatpush1.msra.mxu0 0.0
    %118 = vmatprep.subr.mxu0 0.0
    %119 = vmatpush1.msra.mxu0 0.0
    %120 = vmatprep.subr.mxu0 0.0
    %121 = vmatpush1.msra.mxu0 0.0
    %122 = vmatprep.subr.mxu0 0.0
    %123 = vmatpush1.msra.mxu0 0.0
    %124 = vmatprep.subr.mxu0 0.0
    %125 = vmatpush1.msra.mxu0 0.0
    %126 = vmatprep.subr.mxu0 0.0
    %127 = vmatpush1.msra.mxu0 0.0
    %128 = vmatprep.subr.mxu0 0.0
    %129 = vmatpush1.msra.mxu0 0.0
    %130 = vmatprep.subr.mxu0 0.0
    %131 = vmatpush1.msra.mxu0 0.0
    %132 = vmatprep.subr.mxu0 0.0
    %133 = vmatpush1.msra.mxu0 0.0
    %134 = vmatprep.subr.mxu0 0.0
    %135 = vmatpush1.msra.mxu0 0.0
    %136 = vmatprep.subr.mxu0 0.0
    %137 = vmatpush1.msra.mxu0 0.0
    %138 = vmatprep.subr.mxu0 0.0
    %139 = vmatpush1.msra.mxu0 0.0
    %140 = vmatprep.subr.mxu0 0.0
    %141 = vmatpush1.msra.mxu0 0.0
    %142 = vmatprep.subr.mxu0 0.0
    %143 = vmatpush1.msra.mxu0 0.0
    %144 = vmatprep.subr.mxu0 0.0
    %145 = vmatpush1.msra.mxu0 0.0
    %146 = vmatprep.subr.mxu0 0.0
    %147 = vmatpush1.msra.mxu0 0.0
    %148 = vmatprep.subr.mxu0 0.0
    %149 = vmatpush1.msra.mxu0 0.0
    %150 = vmatprep.subr.mxu0 0.0
    %151 = vmatpush1.msra.mxu0 0.0
    %152 = vmatprep.subr.mxu0 0.0
    %153 = vmatpush1.msra.mxu0 0.0
    %154 = vmatprep.mubr.f32.mxu0 0.0
    %155 = vmatmul.mubr.f32.gmra.mrb[0].mxu0 %v88
    %v156 = vpop.f32.mrb[0].mxu0
    %v157 = vadd.f32 %v84, %v156
    %v158 = vpop.f32.mrb[0].mxu0
    %159 = vdwg.mxu0
    %vm160 = vcmask 254976
    %161 = vst.msk [vmem:[#allocation8] sm:$0x3] %vm160, %v157
    %v162 = vld [vmem:[%s4] sm:$0x1]
    %v164 = vlaneseq
    %v165 = vshrl.u32 %v164, 7
    %v166 = vsub.s32 0, %v165
    %v167 = vrot.slane %v162, %v166
    %169 = vmatprep.subr.mxu0 0.0
    %170 = vmatpush1.msra.mxu0 %v75
    %171 = vmatprep.subr.mxu0 0.0
    %172 = vmatpush1.msra.mxu0 %v76
    %173 = vmatprep.subr.mxu0 0.0
    %174 = vmatpush1.msra.mxu0 %v77
    %175 = vmatprep.subr.mxu0 0.0
    %176 = vmatpush1.msra.mxu0 %v78
    %177 = vmatprep.subr.mxu0 0.0
    %178 = vmatpush1.msra.mxu0 0.0
    %179 = vmatprep.subr.mxu0 0.0
    %180 = vmatpush1.msra.mxu0 0.0
    %181 = vmatprep.subr.mxu0 0.0
    %182 = vmatpush1.msra.mxu0 0.0
    %183 = vmatprep.subr.mxu0 0.0
    %184 = vmatpush1.msra.mxu0 0.0
    %185 = vmatprep.subr.mxu0 0.0
    %186 = vmatpush1.msra.mxu0 0.0
    %187 = vmatprep.subr.mxu0 0.0
    %188 = vmatpush1.msra.mxu0 0.0
    %189 = vmatprep.subr.mxu0 0.0
    %190 = vmatpush1.msra.mxu0 0.0
    %191 = vmatprep.subr.mxu0 0.0
    %192 = vmatpush1.msra.mxu0 0.0
    %193 = vmatprep.subr.mxu0 0.0
    %194 = vmatpush1.msra.mxu0 0.0
    %195 = vmatprep.subr.mxu0 0.0
    %196 = vmatpush1.msra.mxu0 0.0
    %197 = vmatprep.subr.mxu0 0.0
    %198 = vmatpush1.msra.mxu0 0.0
    %199 = vmatprep.subr.mxu0 0.0
    %200 = vmatpush1.msra.mxu0 0.0
    %201 = vmatprep.subr.mxu0 0.0
    %202 = vmatpush1.msra.mxu0 0.0
    %203 = vmatprep.subr.mxu0 0.0
    %204 = vmatpush1.msra.mxu0 0.0
    %205 = vmatprep.subr.mxu0 0.0
    %206 = vmatpush1.msra.mxu0 0.0
    %207 = vmatprep.subr.mxu0 0.0
    %208 = vmatpush1.msra.mxu0 0.0
    %209 = vmatprep.subr.mxu0 0.0
    %210 = vmatpush1.msra.mxu0 0.0
    %211 = vmatprep.subr.mxu0 0.0
    %212 = vmatpush1.msra.mxu0 0.0
    %213 = vmatprep.subr.mxu0 0.0
    %214 = vmatpush1.msra.mxu0 0.0
    %215 = vmatprep.subr.mxu0 0.0
    %216 = vmatpush1.msra.mxu0 0.0
    %217 = vmatprep.subr.mxu0 0.0
    %218 = vmatpush1.msra.mxu0 0.0
    %219 = vmatprep.subr.mxu0 0.0
    %220 = vmatpush1.msra.mxu0 0.0
    %221 = vmatprep.subr.mxu0 0.0
    %222 = vmatpush1.msra.mxu0 0.0
    %223 = vmatprep.subr.mxu0 0.0
    %224 = vmatpush1.msra.mxu0 0.0
    %225 = vmatprep.subr.mxu0 0.0
    %226 = vmatpush1.msra.mxu0 0.0
    %227 = vmatprep.subr.mxu0 0.0
    %228 = vmatpush1.msra.mxu0 0.0
    %229 = vmatprep.subr.mxu0 0.0
    %230 = vmatpush1.msra.mxu0 0.0
    %231 = vmatprep.subr.mxu0 0.0
    %232 = vmatpush1.msra.mxu0 0.0
    %233 = vmatprep.mubr.f32.mxu0 0.0
    %234 = vmatmul.mubr.f32.gmra.mrb[0].mxu0 %v88
    %v235 = vpop.f32.mrb[0].mxu0
    %v236 = vadd.f32 %v167, %v235
    %v237 = vpop.f32.mrb[0].mxu0
    %238 = vdwg.mxu0
    %239 = vst.msk [vmem:[#allocation9] sm:$0x3] %vm160, %v236
    // Predicated region
    $region34: #{tpu_custom_call.1} parent=1 // pred_check
      _
    $region35: #{tpu_custom_call.1} parent=1 // pred_check_branch
      %241 = sbr.rel (0) target = $region37
    $region36: #{tpu_custom_call.1} parent=1 // pred_region
      %s243 = ssub.s32 32, 32
      %244 = vsyncadd [#allocation4], %s243
      %s246 = sshll.u32 [#allocation8], 4
      %s247 = int_to_ptr.vmem [resolvable:$true] %s246
      %249 = dma.vmem_to_hbm [thread:$0]  %s247, 32, %s5, [#allocation4]
    $region37: #{tpu_custom_call.1} parent=1 // pred_fallthru
      _
    // Predicated region
    $region38: #{tpu_custom_call.1} parent=1 // pred_check
      _
    $region39: #{tpu_custom_call.1} parent=1 // pred_check_branch
      %251 = sbr.rel (0) target = $region41
    $region40: #{tpu_custom_call.1} parent=1 // pred_region
      %s253 = ssub.s32 32, 32
      %254 = vsyncadd [#allocation10], %s253
      %s256 = sshll.u32 [#allocation9], 4
      %s257 = int_to_ptr.vmem [resolvable:$true] %s256
      %259 = dma.vmem_to_hbm [thread:$0]  %s257, 32, %s6, [#allocation10]
    $region41: #{tpu_custom_call.1} parent=1 // pred_fallthru
      _
    // Predicated region
    $region42: #{tpu_custom_call.1} parent=1 // pred_check
      _
    $region43: #{tpu_custom_call.1} parent=1 // pred_check_branch
      %261 = sbr.rel (0) target = $region45
    $region44: #{tpu_custom_call.1} parent=1 // pred_region
      %262 = dma.done [#allocation4], 32
    $region45: #{tpu_custom_call.1} parent=1 // pred_fallthru
      _
    // Predicated region
    $region46: #{tpu_custom_call.1} parent=1 // pred_check
      _
    $region47: #{tpu_custom_call.1} parent=1 // pred_check_branch
      %264 = sbr.rel (0) target = $region49
    $region48: #{tpu_custom_call.1} parent=1 // pred_region
      %265 = dma.done [#allocation10], 32
    $region49: #{tpu_custom_call.1} parent=1 // pred_fallthru
      _
    %266 = vsyncpa [#allocation3], 1
    %267 = vsyncpa [#allocation6], 1
    %268 = vsyncpa [#allocation4], 1
    %269 = vsyncpa [#allocation10], 1

</llo_original>
